<compile_context>
chip_gen: v6e
topology: v6e:2x2x1
jax: 0.10.0
libtpu: 0.0.40
codegen_flags: <defaults>
</compile_context>

<pallas_src>
import functools

import jax
import jax.numpy as jnp
from jax import lax
from jax.experimental import pallas as pl
from jax.experimental.pallas import tpu as pltpu


# ----------------------------------------------------------------------------
# Helpers
# ----------------------------------------------------------------------------

def _round_up(n, m):
    return ((n + m - 1) // m) * m


def _tpu_generation():
    try:
        kind = jax.devices()[0].device_kind.lower().replace(" ", "")
    except Exception:
        return "unknown"
    if "v5lite" in kind or "v5e" in kind:
        return "v5e"
    if "v6" in kind:
        return "v6e"
    if "v7" in kind or "7x" in kind:
        return "v7x"
    return "unknown"


def _gelu_dtype(gen):
    # v6e/v7x have bf16-capable VPU/EUP -> run the GELU polynomial in bf16
    # there; v5e (and unknown chips) keep f32.
    return jnp.float32 if gen in ("v5e", "unknown") else jnp.bfloat16


def _vmem_budget_bytes(gen):
    try:
        cap = int(pltpu.get_tpu_info().vmem_capacity_bytes)
    except Exception:
        cap = (64 if gen == "v7x" else 128) * 1024 * 1024
    # Leave headroom for Mosaic internal scratch / second-matmul staging.
    return int(cap * 0.75)


def _pick_h_tile(h, max_tile):
    """H tile: H itself if small, else the largest multiple-of-128 divisor."""
    if h <= max_tile:
        return h
    for th in range(max_tile, 127, -128):
        if h % th == 0:
            return th
    return h  # fallback: no nice divisor, keep H whole


def _pick_m_tile(m, gen):
    """Row tile: generation-aware target, bounded by padding waste (<15%)."""
    targets = {"v5e": 256, "v6e": 1024, "v7x": 768}
    target = targets.get(gen, 512)
    m8 = _round_up(m, 8)
    tm = min(target, m8)
    if gen == "v7x" and m8 >= 16:
        # Keep >= 2 row tiles so both TensorCores get work under
        # dimension_semantics=("parallel", ...).
        tm = min(tm, _round_up(-(-m8 // 2), 8))
    while tm > 128:
        waste = (_round_up(m, tm) - m) / max(m, 1)
        if waste <= 0.15:
            break
        tm = max(128, _round_up(tm // 2, 8))
    return max(tm, 8)


def _weight_block_spec(shape, index_map, gen):
    if gen == "v5e":
        try:  # deeper weight pipelining on the 128 MiB part
            return pl.BlockSpec(shape, index_map, pipeline_mode=pl.Buffered(3))
        except Exception:
            pass
    return pl.BlockSpec(shape, index_map)


def _erf_approx(x):
    # Abramowitz & Stegun 7.1.26 (|err| < 1.5e-7 in f32).  Uses only
    # mul/add/exp/div/select so it lowers cleanly in Mosaic and can run in
    # bf16 on v6e/v7x.
    a1, a2, a3, a4, a5 = (0.254829592, -0.284496736, 1.421413741,
                          -1.453152027, 1.061405429)
    p = 0.3275911
    ax = jnp.abs(x)
    t = 1.0 / (1.0 + p * ax)
    poly = ((((a5 * t + a4) * t + a3) * t + a2) * t + a1) * t
    y = 1.0 - poly * jnp.exp(-(ax * ax))
    return jnp.where(x < 0, -y, y)


def _gelu_exact(x):
    """Exact (erf) GELU, matching torch.nn.GELU() semantics."""
    return x * 0.5 * (1.0 + _erf_approx(x * 0.7071067811865476))


# ----------------------------------------------------------------------------
# Fused MLP Pallas kernel
# ----------------------------------------------------------------------------

def _mlp_kernel(*refs, compute_dtype, gelu_dtype, has_residual):
    # x_ref: (TM, D) bf16   w1_ref: (D, TH) bf16   b1_ref: (1, TH) f32
    # w2_ref: (TH, D) bf16  b2_ref: (1, D) f32     [res_ref: (TM, D) f32]
    # o_ref: (TM, D) f32    (doubles as the accumulator across the H axis)
    if has_residual:
        x_ref, w1_ref, b1_ref, w2_ref, b2_ref, res_ref, o_ref = refs
    else:
        x_ref, w1_ref, b1_ref, w2_ref, b2_ref, o_ref = refs
        res_ref = None

    h_idx = pl.program_id(1)

    @pl.when(h_idx == 0)
    def _init():
        o_ref[...] = jnp.zeros_like(o_ref)

    x = x_ref[...]
    if x.dtype != compute_dtype:
        x = x.astype(compute_dtype)
    # fc1 on the MXU (bf16 in, f32 accumulate) + bias + exact GELU.
    h = jnp.dot(x, w1_ref[...], preferred_element_type=jnp.float32)
    h = h + b1_ref[...]
    h = _gelu_exact(h.astype(gelu_dtype))
    # TODO(synk): Dropout is identity (inference mode); training-mode dropout
    # would mask via pltpu.prng_seed / pltpu.prng_random_bits here.
    # fc2 partial product accumulated directly into the resident f32 out tile.
    o_ref[...] += jnp.dot(h.astype(compute_dtype), w2_ref[...],
                          preferred_element_type=jnp.float32)

    @pl.when(h_idx == pl.num_programs(1) - 1)
    def _finalize():
        out = o_ref[...] + b2_ref[...]
        if has_residual:
            out = out + res_ref[...]
        o_ref[...] = out


def mlp_pallas(x, w1, b1, w2, b2, *, residual=None, tm=None, th_max=None):
    """Fused Linear->GELU->Linear (+ optional fused residual add).

    x: [..., D]; w1: [D, H]; w2: [H, D].  Returns float32 [..., D].
    """
    orig_shape = x.shape
    D = orig_shape[-1]
    H = w1.shape[1]

    gen = _tpu_generation()
    compute_dtype = jnp.bfloat16
    gelu_dt = _gelu_dtype(gen)

    x2d = x.reshape(-1, D).astype(compute_dtype)   # one-time cast, halves x DMA
    M = x2d.shape[0]

    TM = _pick_m_tile(M, gen) if tm is None else max(8, min(tm, _round_up(M, 8)))
    if th_max is None:
        th_max = 512 if gen == "v5e" else 1024
    TH = _pick_h_tile(H, th_max)

    has_residual = residual is not None
    vmem_budget = _vmem_budget_bytes(gen)

    def working_set_bytes(tm_):
        dbl = 2 * (tm_ * D * 2              # x tile (bf16), double-buffered
                   + D * TH * 2             # w1 tile (bf16)
                   + TH * 4                 # b1 tile (f32)
                   + TH * D * 2             # w2 tile (bf16)
                   + D * 4                  # b2 (f32)
                   + tm_ * D * 4            # f32 out tile (accumulator)
                   + (tm_ * D * 4 if has_residual else 0))
        interm = 2 * tm_ * TH * 4           # GELU intermediate headroom
        return dbl + interm

    while TM > 8 and working_set_bytes(TM) > int(vmem_budget * 0.8):
        TM = max(8, _round_up(TM // 2, 8))

    M_pad = _round_up(M, TM)
    if M_pad != M:
        x2d = jnp.pad(x2d, ((0, M_pad - M), (0, 0)))

    w1c = w1.astype(compute_dtype)   # no-op: weights are stored bf16 at init
    w2c = w2.astype(compute_dtype)
    b1_2d = b1.reshape(1, H).astype(jnp.float32)
    b2_2d = b2.reshape(1, D).astype(jnp.float32)

    inputs = [x2d, w1c, b1_2d, w2c, b2_2d]
    in_specs = [
        pl.BlockSpec((TM, D), lambda i, h: (i, 0)),              # x row tile
        _weight_block_spec((D, TH), lambda i, h: (0, h), gen),   # w1 col tile
        pl.BlockSpec((1, TH), lambda i, h: (0, h)),              # b1 tile
        _weight_block_spec((TH, D), lambda i, h: (h, 0), gen),   # w2 row tile
        pl.BlockSpec((1, D), lambda i, h: (0, 0)),               # b2 (resident)
    ]
    if has_residual:
        r2d = residual.reshape(-1, D).astype(jnp.float32)
        if M_pad != M:
            r2d = jnp.pad(r2d, ((0, M_pad - M), (0, 0)))
        inputs.append(r2d)
        in_specs.append(pl.BlockSpec((TM, D), lambda i, h: (i, 0)))

    kernel = functools.partial(_mlp_kernel, compute_dtype=compute_dtype,
                               gelu_dtype=gelu_dt, has_residual=has_residual)

    # Cost estimate including the per-row-tile weight re-fetch traffic.
    n_row_tiles = M_pad // TM
    bytes_accessed = (x2d.size * x2d.dtype.itemsize
                      + n_row_tiles * (w1c.size + w2c.size) * 2
                      + (b1_2d.size + b2_2d.size) * 4
                      + M_pad * D * 4
                      + (M_pad * D * 4 if has_residual else 0))
    cost = pl.CostEstimate(flops=4 * M_pad * D * H,
                           transcendentals=M_pad * H,
                           bytes_accessed=int(bytes_accessed))

    vmem_limit = min(max(int(working_set_bytes(TM) * 1.25) + (2 << 20),
                         16 * 1024 * 1024), vmem_budget)

    out = pl.pallas_call(
        kernel,
        out_shape=jax.ShapeDtypeStruct((M_pad, D), jnp.float32),
        grid_spec=pltpu.PrefetchScalarGridSpec(
            num_scalar_prefetch=0,
            grid=(M_pad // TM, H // TH),
            in_specs=in_specs,
            out_specs=pl.BlockSpec((TM, D), lambda i, h: (i, 0)),
        ),
        compiler_params=pltpu.CompilerParams(
            dimension_semantics=("parallel", "arbitrary"),
            vmem_limit_bytes=vmem_limit,
        ),
        cost_estimate=cost,
    )(*inputs)

    if M_pad != M:
        out = out[:M]
    return out.reshape(orig_shape)


def mlp_reference(x, w1, b1, w2, b2, residual=None, gelu_dtype=jnp.float32):
    """Plain-JAX reference mirroring the kernel's bf16-MXU / f32-accum numerics."""
    cd = jnp.bfloat16
    h = jnp.dot(x.astype(cd), w1.astype(cd), preferred_element_type=jnp.float32)
    h = h + b1.astype(jnp.float32)
    h = _gelu_exact(h.astype(gelu_dtype))
    o = jnp.dot(h.astype(cd), w2.astype(cd), preferred_element_type=jnp.float32)
    o = o + b2.astype(jnp.float32)
    if residual is not None:
        o = o + residual.astype(jnp.float32)
    return o


# ----------------------------------------------------------------------------
# Remaining VisionTransformer pieces (plain JAX/XLA, eval-mode dropout = id).
# TODO(synk): attention / layernorm / convs / bilinear upsample stay on XLA;
# only the MLP block (+ its residual add) is a custom Pallas kernel here.
# ----------------------------------------------------------------------------

def layer_norm(x, gamma, beta, eps=1e-5):
    mu = jnp.mean(x, axis=-1, keepdims=True)
    var = jnp.mean(jnp.square(x - mu), axis=-1, keepdims=True)
    return (x - mu) * lax.rsqrt(var + eps) * gamma + beta


def multi_head_attention(x, p, num_heads):
    B, N, E = x.shape
    hd = E // num_heads
    qkv = x @ p["w_in"].T + p["b_in"]                      # [B, N, 3E]
    q, k, v = jnp.split(qkv, 3, axis=-1)

    def heads(t):
        return t.reshape(B, N, num_heads, hd).transpose(0, 2, 1, 3)

    q, k, v = heads(q), heads(k), heads(v)
    scores = jnp.einsum("bhqd,bhkd->bhqk", q, k) / jnp.sqrt(
        jnp.asarray(hd, x.dtype))
    attn = jax.nn.softmax(scores, axis=-1)
    o = jnp.einsum("bhqk,bhkd->bhqd", attn, v)
    o = o.transpose(0, 2, 1, 3).reshape(B, N, E)
    return o @ p["w_out"].T + p["b_out"]


def encoder_layer(x, p, num_heads):
    n1 = layer_norm(x, p["ln1_g"], p["ln1_b"])
    x = x + multi_head_attention(n1, p["attn"], num_heads)
    n2 = layer_norm(x, p["ln2_g"], p["ln2_b"])
    # Residual add is fused into the Pallas MLP kernel (saves an MxD HBM pass).
    return mlp_pallas(n2, p["mlp_w1"], p["mlp_b1"], p["mlp_w2"], p["mlp_b2"],
                      residual=x)


def patch_embed(x, p, patch_size):
    y = lax.conv_general_dilated(
        x, p["proj_w"], (patch_size, patch_size), "VALID",
        dimension_numbers=("NCHW", "OIHW", "NCHW"))
    y = y + p["proj_b"].reshape(1, -1, 1, 1)
    B, E, Hg, Wg = y.shape
    tokens = y.reshape(B, E, Hg * Wg).transpose(0, 2, 1) + p["pos_embed"]
    return tokens, (Hg, Wg)


def decoder(x, grid_size, p, patch_size):
    B, _, E = x.shape
    Hg, Wg = grid_size
    y = x.transpose(0, 2, 1).reshape(B, E, Hg, Wg)
    y = lax.conv_general_dilated(
        y, p["conv_w"], (1, 1), ((1, 1), (1, 1)),
        dimension_numbers=("NCHW", "OIHW", "NCHW"))
    y = jax.nn.relu(y + p["conv_b"].reshape(1, -1, 1, 1))
    # ConvTranspose2d with kernel_size == stride == patch_size: each input
    # pixel expands into its own (patch x patch) output block.
    w = p["deconv_w"]                                      # [E, Cout, k, k]
    c_out, k = w.shape[1], w.shape[2]
    out = jnp.einsum("behw,eckl->bchkwl", y, w)
    out = out.reshape(B, c_out, Hg * k, Wg * k)
    return out + p["deconv_b"].reshape(1, -1, 1, 1)


def vit_forward(params, x, cfg):
    uf = cfg["upsample_factor"]
    B, C, Hi, Wi = x.shape
    # nn.Upsample(bilinear, align_corners=False): half-pixel centers.
    x = jax.image.resize(x, (B, C, Hi * uf, Wi * uf), method="bilinear")
    tokens, grid_size = patch_embed(x, params["patch_embed"], cfg["patch_size"])
    for lp in params["layers"]:
        tokens = encoder_layer(tokens, lp, cfg["num_heads"])
    tokens = layer_norm(tokens, params["norm_g"], params["norm_b"])
    return decoder(tokens, grid_size, params["decoder"], cfg["patch_size"])


# ----------------------------------------------------------------------------
# Deterministic parameter init (mimics nn.Linear/Conv uniform +/- 1/sqrt(fan_in))
# ----------------------------------------------------------------------------

def _uniform(key, fan_in, shape, dtype):
    bound = 1.0 / (fan_in ** 0.5)
    return jax.random.uniform(key, shape, dtype, -bound, bound)


def init_vit_params(key, cfg, dtype=jnp.float32, mlp_weight_dtype=jnp.bfloat16):
    img, uf, p = cfg["img_size"], cfg["upsample_factor"], cfg["patch_size"]
    E, Hm, Ci = cfg["embed_dim"], cfg["mlp_dim"], cfg["in_channels"]
    up = (img[0] * uf, img[1] * uf)
    grid = (up[0] // p, up[1] // p)
    num_patches = grid[0] * grid[1]

    keys = iter(jax.random.split(key, 16 + 8 * cfg["depth"]))
    nk = lambda: next(keys)

    params = {
        "patch_embed": {
            "proj_w": _uniform(nk(), Ci * p * p, (E, Ci, p, p), dtype),
            "proj_b": _uniform(nk(), Ci * p * p, (E,), dtype),
            "pos_embed": 0.02 * jax.random.normal(nk(), (1, num_patches, E), dtype),
        },
        "layers": [],
        "norm_g": jnp.ones((E,), dtype),
        "norm_b": jnp.zeros((E,), dtype),
        "decoder": {
            "conv_w": _uniform(nk(), E * 9, (E, E, 3, 3), dtype),
            "conv_b": _uniform(nk(), E * 9, (E,), dtype),
            "deconv_w": _uniform(nk(), E, (E, 3, p, p), dtype),
            "deconv_b": _uniform(nk(), E, (3,), dtype),
        },
    }
    for _ in range(cfg["depth"]):
        params["layers"].append({
            "ln1_g": jnp.ones((E,), dtype), "ln1_b": jnp.zeros((E,), dtype),
            "ln2_g": jnp.ones((E,), dtype), "ln2_b": jnp.zeros((E,), dtype),
            "attn": {
                "w_in": _uniform(nk(), E, (3 * E, E), dtype),
                "b_in": jnp.zeros((3 * E,), dtype),
                "w_out": _uniform(nk(), E, (E, E), dtype),
                "b_out": jnp.zeros((E,), dtype),
            },
            # MLP weights stored [in, out] (transposed vs torch's [out, in]),
            # cast once to bf16 so the kernel streams half the weight bytes.
            "mlp_w1": _uniform(nk(), E, (E, Hm), dtype).astype(mlp_weight_dtype),
            "mlp_b1": _uniform(nk(), E, (Hm,), dtype),
            "mlp_w2": _uniform(nk(), Hm, (Hm, E), dtype).astype(mlp_weight_dtype),
            "mlp_b2": _uniform(nk(), Hm, (E,), dtype),
        })
    return params


if __name__ == "__main__":
    key = jax.random.PRNGKey(0)
    k_x, k_p, k_m = jax.random.split(key, 3)
    gen = _tpu_generation()
    gelu_dt = _gelu_dtype(gen)

    cfg = dict(img_size=(8, 8), patch_size=4, embed_dim=32, depth=2,
               num_heads=4, mlp_dim=64, drop_rate=0.2, in_channels=3,
               upsample_factor=2)
    params = init_vit_params(k_p, cfg)
    lp0 = params["layers"][0]

    # 1) Standalone fused-MLP kernel check (ragged seq exercises row padding).
    xm = jax.random.normal(k_m, (2, 7, cfg["embed_dim"]), dtype=jnp.float32)
    y = mlp_pallas(xm, lp0["mlp_w1"], lp0["mlp_b1"], lp0["mlp_w2"], lp0["mlp_b2"])
    jax.block_until_ready(y)
    y_ref = mlp_reference(xm, lp0["mlp_w1"], lp0["mlp_b1"],
                          lp0["mlp_w2"], lp0["mlp_b2"], gelu_dtype=gelu_dt)
    assert y.shape == xm.shape
    assert jnp.allclose(y, y_ref, atol=2e-2, rtol=2e-2), \
        float(jnp.max(jnp.abs(y - y_ref)))

    # 2) Residual-fused path (as used inside the encoder layers).
    res = jax.random.normal(jax.random.PRNGKey(1), xm.shape, dtype=jnp.float32)
    y2 = mlp_pallas(xm, lp0["mlp_w1"], lp0["mlp_b1"], lp0["mlp_w2"],
                    lp0["mlp_b2"], residual=res)
    jax.block_until_ready(y2)
    y2_ref = mlp_reference(xm, lp0["mlp_w1"], lp0["mlp_b1"], lp0["mlp_w2"],
                           lp0["mlp_b2"], residual=res, gelu_dtype=gelu_dt)
    assert jnp.allclose(y2, y2_ref, atol=2e-2, rtol=2e-2), \
        float(jnp.max(jnp.abs(y2 - y2_ref)))

    # 3) Full VisionTransformer forward (every MLP block runs the Pallas kernel).
    x = jax.random.normal(k_x, (2, cfg["in_channels"], *cfg["img_size"]),
                          dtype=jnp.float32)
    out = vit_forward(params, x, cfg)
    jax.block_until_ready(out)

    up = (cfg["img_size"][0] * cfg["upsample_factor"],
          cfg["img_size"][1] * cfg["upsample_factor"])
    assert out.shape == (2, 3, up[0], up[1]), out.shape
    assert bool(jnp.all(jnp.isfinite(out)))

    print("KERNEL_OK")
</pallas_src>

<mosaic_0001>
module attributes {stable_mosaic.version = 11 : i64} {
  func.func @_mlp_kernel(%arg0: i32, %arg1: i32, %arg2: memref<16x32xbf16, #tpu.memory_space<vmem>>, %arg3: memref<32x64xbf16, #tpu.memory_space<vmem>>, %arg4: memref<1x64xf32, #tpu.memory_space<vmem>>, %arg5: memref<64x32xbf16, #tpu.memory_space<vmem>>, %arg6: memref<1x32xf32, #tpu.memory_space<vmem>>, %arg7: memref<16x32xf32, #tpu.memory_space<vmem>>) attributes {dimension_semantics = [#tpu.dimension_semantics<parallel>, #tpu.dimension_semantics<arbitrary>], iteration_bounds = array<i64: 1, 1>, scalar_prefetch = 0 : i64, scratch_operands = 0 : i64, tpu.core_type = #tpu.core_type<tc>, window_params = [{transform_indices = @transform_0, window_bounds = array<i64: 16, 32>}, {transform_indices = @transform_1, window_bounds = array<i64: 32, 64>}, {transform_indices = @transform_2, window_bounds = array<i64: 1, 64>}, {transform_indices = @transform_3, window_bounds = array<i64: 64, 32>}, {pipeline_mode = #tpu.pipeline_mode<synchronous>, transform_indices = @transform_4, window_bounds = array<i64: 1, 32>}, {transform_indices = @transform_5, window_bounds = array<i64: 16, 32>}]} {
    %c0_i32 = arith.constant 0 : i32
    %0 = arith.cmpi eq, %arg1, %c0_i32 : i32
    %1 = arith.extui %0 : i1 to i32
    %c0_i32_0 = arith.constant 0 : i32
    %2 = arith.cmpi ne, %1, %c0_i32_0 : i32
    scf.if %2 {
      %cst_30 = arith.constant 0.000000e+00 : f32
      %58 = vector.broadcast %cst_30 : f32 to vector<16x32xf32>
      %c0_31 = arith.constant 0 : index
      %c0_32 = arith.constant 0 : index
      %59 = vector.load %arg7[%c0_31, %c0_32] : memref<16x32xf32, #tpu.memory_space<vmem>>, vector<16x32xf32>
      tpu.vector_store %arg7[%c0_31, %c0_32], %58 {strides = array<i32>} : memref<16x32xf32, #tpu.memory_space<vmem>>, vector<16x32xf32>,
    } else {
    }
    %c0 = arith.constant 0 : index
    %c0_1 = arith.constant 0 : index
    %3 = vector.load %arg2[%c0, %c0_1] : memref<16x32xbf16, #tpu.memory_space<vmem>>, vector<16x32xbf16>
    %c0_2 = arith.constant 0 : index
    %c0_3 = arith.constant 0 : index
    %4 = vector.load %arg3[%c0_2, %c0_3] : memref<32x64xbf16, #tpu.memory_space<vmem>>, vector<32x64xbf16>
    %cst = arith.constant dense<0.000000e+00> : vector<16x64xf32>
    %5 = tpu.matmul %3, %4, %cst {dimension_numbers = #tpu.dot_dimension_numbers<[1], [0], [0], [1], [0, 0, 1, 1], [], []>} : vector<16x32xbf16>, vector<32x64xbf16>, vector<16x64xf32> -> vector<16x64xf32>
    %c0_4 = arith.constant 0 : index
    %c0_5 = arith.constant 0 : index
    %6 = vector.load %arg4[%c0_4, %c0_5] : memref<1x64xf32, #tpu.memory_space<vmem>>, vector<1x64xf32>
    %7 = vector.broadcast %6 : vector<1x64xf32> to vector<16x64xf32>
    %8 = arith.addf %5, %7 : vector<16x64xf32>
    %cst_6 = arith.constant 5.000000e-01 : f32
    %9 = vector.broadcast %cst_6 : f32 to vector<16x64xf32>
    %10 = arith.mulf %8, %9 : vector<16x64xf32>
    %cst_7 = arith.constant 0.707106769 : f32
    %11 = vector.broadcast %cst_7 : f32 to vector<16x64xf32>
    %12 = arith.mulf %8, %11 : vector<16x64xf32>
    %13 = math.absf %12 : vector<16x64xf32>
    %cst_8 = arith.constant 0.327591091 : f32
    %14 = vector.broadcast %cst_8 : f32 to vector<16x64xf32>
    %15 = arith.mulf %14, %13 : vector<16x64xf32>
    %cst_9 = arith.constant 1.000000e+00 : f32
    %16 = vector.broadcast %cst_9 : f32 to vector<16x64xf32>
    %17 = arith.addf %16, %15 : vector<16x64xf32>
    %cst_10 = arith.constant 1.000000e+00 : f32
    %18 = vector.broadcast %cst_10 : f32 to vector<16x64xf32>
    %19 = arith.divf %18, %17 : vector<16x64xf32>
    %cst_11 = arith.constant 1.06140542 : f32
    %20 = vector.broadcast %cst_11 : f32 to vector<16x64xf32>
    %21 = arith.mulf %20, %19 : vector<16x64xf32>
    %cst_12 = arith.constant -1.45315206 : f32
    %22 = vector.broadcast %cst_12 : f32 to vector<16x64xf32>
    %23 = arith.addf %21, %22 : vector<16x64xf32>
    %24 = arith.mulf %23, %19 : vector<16x64xf32>
    %cst_13 = arith.constant 1.42141378 : f32
    %25 = vector.broadcast %cst_13 : f32 to vector<16x64xf32>
    %26 = arith.addf %24, %25 : vector<16x64xf32>
    %27 = arith.mulf %26, %19 : vector<16x64xf32>
    %cst_14 = arith.constant -0.284496725 : f32
    %28 = vector.broadcast %cst_14 : f32 to vector<16x64xf32>
    %29 = arith.addf %27, %28 : vector<16x64xf32>
    %30 = arith.mulf %29, %19 : vector<16x64xf32>
    %cst_15 = arith.constant 0.254829586 : f32
    %31 = vector.broadcast %cst_15 : f32 to vector<16x64xf32>
    %32 = arith.addf %30, %31 : vector<16x64xf32>
    %33 = arith.mulf %32, %19 : vector<16x64xf32>
    %34 = arith.mulf %13, %13 : vector<16x64xf32>
    %cst_16 = arith.constant 0.000000e+00 : f32
    %35 = vector.broadcast %cst_16 : f32 to vector<16x64xf32>
    %36 = arith.subf %35, %34 : vector<16x64xf32>
    %37 = math.exp %36 : vector<16x64xf32>
    %38 = arith.mulf %33, %37 : vector<16x64xf32>
    %cst_17 = arith.constant 1.000000e+00 : f32
    %39 = vector.broadcast %cst_17 : f32 to vector<16x64xf32>
    %40 = arith.subf %39, %38 : vector<16x64xf32>
    %cst_18 = arith.constant 0.000000e+00 : f32
    %41 = vector.broadcast %cst_18 : f32 to vector<16x64xf32>
    %42 = arith.cmpf olt, %12, %41 : vector<16x64xf32>
    %cst_19 = arith.constant 0.000000e+00 : f32
    %43 = vector.broadcast %cst_19 : f32 to vector<16x64xf32>
    %44 = arith.subf %43, %40 : vector<16x64xf32>
    %45 = arith.select %42, %44, %40 : vector<16x64xi1>, vector<16x64xf32>
    %cst_20 = arith.constant 1.000000e+00 : f32
    %46 = vector.broadcast %cst_20 : f32 to vector<16x64xf32>
    %47 = arith.addf %46, %45 : vector<16x64xf32>
    %48 = arith.mulf %10, %47 : vector<16x64xf32>
    %c0_21 = arith.constant 0 : index
    %c0_22 = arith.constant 0 : index
    %49 = vector.load %arg7[%c0_21, %c0_22] : memref<16x32xf32, #tpu.memory_space<vmem>>, vector<16x32xf32>
    %50 = arith.truncf %48 : vector<16x64xf32> to vector<16x64xbf16>
    %c0_23 = arith.constant 0 : index
    %c0_24 = arith.constant 0 : index
    %51 = vector.load %arg5[%c0_23, %c0_24] : memref<64x32xbf16, #tpu.memory_space<vmem>>, vector<64x32xbf16>
    %cst_25 = arith.constant dense<0.000000e+00> : vector<16x32xf32>
    %52 = tpu.matmul %50, %51, %cst_25 {dimension_numbers = #tpu.dot_dimension_numbers<[1], [0], [0], [1], [0, 0, 1, 1], [], []>} : vector<16x64xbf16>, vector<64x32xbf16>, vector<16x32xf32> -> vector<16x32xf32>
    %53 = arith.addf %49, %52 : vector<16x32xf32>
    %c0_26 = arith.constant 0 : index
    %c0_27 = arith.constant 0 : index
    %54 = vector.load %arg7[%c0_26, %c0_27] : memref<16x32xf32, #tpu.memory_space<vmem>>, vector<16x32xf32>
    tpu.vector_store %arg7[%c0_26, %c0_27], %53 {strides = array<i32>} : memref<16x32xf32, #tpu.memory_space<vmem>>, vector<16x32xf32>,
    %c0_i32_28 = arith.constant 0 : i32
    %55 = arith.cmpi eq, %arg1, %c0_i32_28 : i32
    %56 = arith.extui %55 : i1 to i32
    %c0_i32_29 = arith.constant 0 : i32
    %57 = arith.cmpi ne, %56, %c0_i32_29 : i32
    scf.if %57 {
      %c0_30 = arith.constant 0 : index
      %c0_31 = arith.constant 0 : index
      %58 = vector.load %arg7[%c0_30, %c0_31] : memref<16x32xf32, #tpu.memory_space<vmem>>, vector<16x32xf32>
      %c0_32 = arith.constant 0 : index
      %c0_33 = arith.constant 0 : index
      %59 = vector.load %arg6[%c0_32, %c0_33] : memref<1x32xf32, #tpu.memory_space<vmem>>, vector<1x32xf32>
      %60 = vector.broadcast %59 : vector<1x32xf32> to vector<16x32xf32>
      %61 = arith.addf %58, %60 : vector<16x32xf32>
      %c0_34 = arith.constant 0 : index
      %c0_35 = arith.constant 0 : index
      %62 = vector.load %arg7[%c0_34, %c0_35] : memref<16x32xf32, #tpu.memory_space<vmem>>, vector<16x32xf32>
      tpu.vector_store %arg7[%c0_34, %c0_35], %61 {strides = array<i32>} : memref<16x32xf32, #tpu.memory_space<vmem>>, vector<16x32xf32>,
    } else {
    }
    return
  }
  func.func @transform_0(%arg0: i32, %arg1: i32) -> (i32, i32) {
    %c0_i32 = arith.constant 0 : i32
    %c0_i32_0 = arith.constant 0 : i32
    return %arg0, %c0_i32 : i32, i32
  }
  func.func @transform_1(%arg0: i32, %arg1: i32) -> (i32, i32) {
    %c0_i32 = arith.constant 0 : i32
    %c0_i32_0 = arith.constant 0 : i32
    return %c0_i32, %arg1 : i32, i32
  }
  func.func @transform_2(%arg0: i32, %arg1: i32) -> (i32, i32) {
    %c0_i32 = arith.constant 0 : i32
    %c0_i32_0 = arith.constant 0 : i32
    return %c0_i32, %arg1 : i32, i32
  }
  func.func @transform_3(%arg0: i32, %arg1: i32) -> (i32, i32) {
    %c0_i32 = arith.constant 0 : i32
    %c0_i32_0 = arith.constant 0 : i32
    return %arg1, %c0_i32 : i32, i32
  }
  func.func @transform_4(%arg0: i32, %arg1: i32) -> (i32, i32) {
    %c0_i32 = arith.constant 0 : i32
    %c0_i32_0 = arith.constant 0 : i32
    %c0_i32_1 = arith.constant 0 : i32
    return %c0_i32, %c0_i32_0 : i32, i32
  }
  func.func @transform_5(%arg0: i32, %arg1: i32) -> (i32, i32) {
    %c0_i32 = arith.constant 0 : i32
    %c0_i32_0 = arith.constant 0 : i32
    return %arg0, %c0_i32 : i32, i32
  }
}

</mosaic_0001>

<llo_original>
// kernel: tpu_custom_call.1
$region0: #{tpu_custom_call.1}
  #allocation0 [shape = 'u32[]', space=smem, size = 0x4, offset = 0x4, fixed_abs, tag = 'smem constant byte address 0x4 - core index']
  #allocation1 [shape = 'u32[144,128]{1,0:T(1,128)}', space=vmem, size = 0x12000, scoped, tag = 'internal scratch']
  %s0 = inlined_call_operand.vmem [shape: bf16[16,32], index: 0, kind: input, shape index: {}]
  %s1 = inlined_call_operand.vmem [shape: bf16[32,64], index: 1, kind: input, shape index: {}]
  %s2 = inlined_call_operand.vmem [shape: f32[1,64], index: 2, kind: input, shape index: {}]
  %s3 = inlined_call_operand.vmem [shape: bf16[64,32], index: 3, kind: input, shape index: {}]
  %s4 = inlined_call_operand.vmem [shape: f32[1,32], index: 4, kind: input, shape index: {}]
  %s5 = inlined_call_operand.hbm [shape: f32[16,32], index: 5, kind: output, shape index: {}]
  %s6 = sld [smem:[#allocation0]]
  $region38: #{tpu_custom_call.1} parent=0
    _
  %s8 = ssub.s32 1, %s6
  %s9 = scalar_select 0, %s8, %s6
  $region1: #{tpu_custom_call.1} parent=0
    #allocation2 [shape = 'u8[8192]{0}', space=vmem, size = 0x2000, scoped, tag = 'output window, operand 0, single buffered']
    #allocation3 [shape = 's32[1]{0}', space=sflag, size = 0x4, scoped, tag = 'scoped memory for tpu_custom_call.1']
    %10 = vsyncpa [#allocation3], 0
    // Predicated region
    $region2: #{tpu_custom_call.1} parent=1 // pred_check
      _
    $region3: #{tpu_custom_call.1} parent=1 // pred_check_branch
      %12 = sbr.rel (0) target = $region5
    $region4: #{tpu_custom_call.1} parent=1 // pred_region
      _
    $region5: #{tpu_custom_call.1} parent=1 // pred_fallthru
      _
    // Predicated region
    $region6: #{tpu_custom_call.1} parent=1 // pred_check
      _
    $region7: #{tpu_custom_call.1} parent=1 // pred_check_branch
      %14 = sbr.rel (0) target = $region9
    $region8: #{tpu_custom_call.1} parent=1 // pred_region
      _
    $region9: #{tpu_custom_call.1} parent=1 // pred_fallthru
      _
    // Predicated region
    $region10: #{tpu_custom_call.1} parent=1 // pred_check
      _
    $region11: #{tpu_custom_call.1} parent=1 // pred_check_branch
      %16 = sbr.rel (0) target = $region13
    $region12: #{tpu_custom_call.1} parent=1 // pred_region
      _
    $region13: #{tpu_custom_call.1} parent=1 // pred_fallthru
      _
    // Predicated region
    $region14: #{tpu_custom_call.1} parent=1 // pred_check
      _
    $region15: #{tpu_custom_call.1} parent=1 // pred_check_branch
      %18 = sbr.rel (0) target = $region17
    $region16: #{tpu_custom_call.1} parent=1 // pred_region
      _
    $region17: #{tpu_custom_call.1} parent=1 // pred_fallthru
      _
    // Predicated region
    $region18: #{tpu_custom_call.1} parent=1 // pred_check
      _
    $region19: #{tpu_custom_call.1} parent=1 // pred_check_branch
      %20 = sbr.rel (0) target = $region21
    $region20: #{tpu_custom_call.1} parent=1 // pred_region
      _
    $region21: #{tpu_custom_call.1} parent=1 // pred_fallthru
      _
    %p22 = scmp.eq.s32.totalorder 0, 0
    // Predicated region
    $region22: #{tpu_custom_call.1} parent=1 // pred_check
      %p23 = pneg %p22
    $region23: #{tpu_custom_call.1} parent=1 // pred_check_branch
      %25 = sbr.rel (%p23) target = $region25
    $region24: #{tpu_custom_call.1} parent=1 // pred_region
      %vm26 = vcmask 261120
      %27 = vst.msk [vmem:[#allocation2] sm:$0xff] %vm26, 0.0
      %28 = vst.msk [vmem:[#allocation2 + $0x8] sm:$0xff] %vm26, 0.0
    $region25: #{tpu_custom_call.1} parent=1 // pred_fallthru
      _
    %v29 = vld [vmem:[%s0] sm:$0xf]
    %v30 = vld [vmem:[%s0 + $0x4] sm:$0xf]
    %v31 = vld [vmem:[%s1] sm:$0xf]
    %v32 = vld [vmem:[%s1 + $0x4] sm:$0xf]
    %v33 = vld [vmem:[%s1 + $0x8] sm:$0xf]
    %v34 = vld [vmem:[%s1 + $0xc] sm:$0xf]
    %v35 = vld [vmem:[%s2] sm:$0x1]
    %v37 = vlaneseq
    %v38 = vshrl.u32 %v37, 7
    %v39 = vsub.s32 0, %v38
    %v40 = vrot.slane %v35, %v39
    %v44 = vunpack.c.l.b16 %v29
    %v45 = vunpack.c.l.b16 %v30
    %v46 = vpack.c.b16 %v45, %v44
    %v51 = vunpack.c.l.b16 %v31
    %v52 = vunpack.c.l.b16 %v32
    %v53 = vunpack.c.l.b16 %v33
    %v54 = vunpack.c.l.b16 %v34
    %v55 = vpack.c.b16 %v52, %v51
    %v56 = vpack.c.b16 %v54, %v53
    %vm59 = vcmask 261120
    %v61 = vsel %vm59, %v46, 0
    %63 = vmatprep.subr.bf16.mxu0 0
    %64 = vmatpush1.bf16.msra.mxu0 0
    %65 = vmatprep.subr.bf16.mxu0 0
    %66 = vmatpush1.bf16.msra.mxu0 0
    %67 = vmatprep.subr.bf16.mxu0 0
    %68 = vmatpush1.bf16.msra.mxu0 0
    %69 = vmatprep.subr.bf16.mxu0 0
    %70 = vmatpush1.bf16.msra.mxu0 0
    %71 = vmatprep.subr.bf16.mxu0 0
    %72 = vmatpush1.bf16.msra.mxu0 0
    %73 = vmatprep.subr.bf16.mxu0 0
    %74 = vmatpush1.bf16.msra.mxu0 0
    %75 = vmatprep.subr.bf16.mxu0 0
    %76 = vmatpush1.bf16.msra.mxu0 %v56
    %77 = vmatprep.subr.bf16.mxu0 0
    %78 = vmatpush1.bf16.msra.mxu0 %v55
    %79 = vmatprep.subr.bf16.mxu0 0
    %80 = vmatpush2.bf16.msra.mxu0 0
    %81 = vmatprep.subr.bf16.mxu0 0
    %82 = vmatpush2.bf16.msra.mxu0 0
    %83 = vmatprep.subr.bf16.mxu0 0
    %84 = vmatpush2.bf16.msra.mxu0 0
    %85 = vmatprep.subr.bf16.mxu0 0
    %86 = vmatpush2.bf16.msra.mxu0 0
    %87 = vmatprep.subr.bf16.mxu0 0
    %88 = vmatpush2.bf16.msra.mxu0 0
    %89 = vmatprep.subr.bf16.mxu0 0
    %90 = vmatpush2.bf16.msra.mxu0 0
    %91 = vmatprep.subr.bf16.mxu0 0
    %92 = vmatpush2.bf16.msra.mxu0 0
    %93 = vmatprep.subr.bf16.mxu0 0
    %94 = vmatpush2.bf16.msra.mxu0 0
    %95 = vmatprep.mubr.bf16.mxu0 0
    %96 = vmatmul.mubr.bf16.gmra.mxu0 %v61
    %v97 = vpop.f32.mrf.mxu0
    %v98 = vadd.f32 %v40, %v97
    %v99 = vpop.f32.mrf.mxu0
    %v100 = vpop.f32.mrf.mxu0
    %v101 = vadd.f32 %v40, %v100
    %v102 = vpop.f32.mrf.mxu0
    %103 = vdwg.mxu0
    %v104 = vmul.f32 %v98, 0.5
    %v105 = vmul.f32 %v101, 0.5
    %v106 = vmul.f32 %v98, 0.70710677
    %v107 = vmul.f32 %v101, 0.70710677
    %v108 = vand.u32 2147483647, %v106
    %v109 = vand.u32 2147483647, %v107
    %v110 = vmul.f32 %v108, 0.3275911
    %v111 = vmul.f32 %v109, 0.3275911
    %v112 = vadd.f32 %v110, 1.0
    %v113 = vadd.f32 %v111, 1.0
    %v114 = vrcp.pop %v112
    %v115 = vmul.f32 1.0, %v114
    %v116 = vrcp.pop %v113
    %v117 = vmul.f32 1.0, %v116
    %v118 = vmul.f32 %v115, 1.0614054
    %v119 = vmul.f32 %v117, 1.0614054
    %v120 = vadd.f32 %v118, -1.4531521
    %v121 = vadd.f32 %v119, -1.4531521
    %v122 = vmul.f32 %v120, %v115
    %v123 = vmul.f32 %v121, %v117
    %v124 = vadd.f32 %v122, 1.4214138
    %v125 = vadd.f32 %v123, 1.4214138
    %v126 = vmul.f32 %v124, %v115
    %v127 = vmul.f32 %v125, %v117
    %v128 = vadd.f32 %v126, -0.28449672
    %v129 = vadd.f32 %v127, -0.28449672
    %v130 = vmul.f32 %v128, %v115
    %v131 = vmul.f32 %v129, %v117
    %v132 = vadd.f32 %v130, 0.2548296
    %v133 = vadd.f32 %v131, 0.2548296
    %v134 = vmul.f32 %v132, %v115
    %v135 = vmul.f32 %v133, %v117
    %v136 = vmul.f32 %v108, %v108
    %v137 = vmul.f32 %v109, %v109
    %v138 = vsub.f32 0.0, %v136
    %v139 = vsub.f32 0.0, %v137
    %v140 = vmul.f32 %v138, 1.442695
    %v141 = vpow.pop %v140
    %v142 = vmul.f32 %v139, 1.442695
    %v143 = vpow.pop %v142
    %v144 = vmul.f32 %v134, %v141
    %v145 = vmul.f32 %v135, %v143
    %v146 = vsub.f32 1.0, %v144
    %v147 = vsub.f32 1.0, %v145
    %vm148 = vcmp.lt.f32.partialorder %v106, 0.0
    %vm149 = vcmp.lt.f32.partialorder %v107, 0.0
    %v150 = vsub.f32 0.0, %v146
    %v151 = vsub.f32 0.0, %v147
    %v152 = vsel %vm148, %v150, %v146
    %v153 = vsel %vm149, %v151, %v147
    %v154 = vadd.f32 %v152, 1.0
    %v155 = vadd.f32 %v153, 1.0
    %v156 = vmul.f32 %v104, %v154
    %v157 = vmul.f32 %v105, %v155
    %v158 = vld [vmem:[#allocation2] sm:$0xff]
    %v159 = vld [vmem:[#allocation2 + $0x8] sm:$0xff]
    %v160 = vpack.c.bf16 %v157, %v156
    %v161 = vld [vmem:[%s3] sm:$0xf]
    %v162 = vld [vmem:[%s3 + $0x4] sm:$0xf]
    %v163 = vld [vmem:[%s3 + $0x8] sm:$0xf]
    %v164 = vld [vmem:[%s3 + $0xc] sm:$0xf]
    %v165 = vld [vmem:[%s3 + $0x10] sm:$0xf]
    %v166 = vld [vmem:[%s3 + $0x14] sm:$0xf]
    %v167 = vld [vmem:[%s3 + $0x18] sm:$0xf]
    %v168 = vld [vmem:[%s3 + $0x1c] sm:$0xf]
    %v177 = vunpack.c.l.b16 %v161
    %v178 = vunpack.c.l.b16 %v162
    %v179 = vunpack.c.l.b16 %v163
    %v180 = vunpack.c.l.b16 %v164
    %v181 = vunpack.c.l.b16 %v165
    %v182 = vunpack.c.l.b16 %v166
    %v183 = vunpack.c.l.b16 %v167
    %v184 = vunpack.c.l.b16 %v168
    %v185 = vpack.c.b16 %v178, %v177
    %v186 = vpack.c.b16 %v180, %v179
    %v187 = vpack.c.b16 %v182, %v181
    %v188 = vpack.c.b16 %v184, %v183
    %vm193 = vcmask 523264
    %v195 = vsel %vm193, %v160, 0
    %197 = vmatprep.subr.bf16.mxu0 0
    %198 = vmatpush1.bf16.msra.mxu0 0
    %199 = vmatprep.subr.bf16.mxu0 0
    %200 = vmatpush1.bf16.msra.mxu0 0
    %201 = vmatprep.subr.bf16.mxu0 0
    %202 = vmatpush1.bf16.msra.mxu0 0
    %203 = vmatprep.subr.bf16.mxu0 0
    %204 = vmatpush1.bf16.msra.mxu0 0
    %205 = vmatprep.subr.bf16.mxu0 0
    %206 = vmatpush1.bf16.msra.mxu0 %v188
    %207 = vmatprep.subr.bf16.mxu0 0
    %208 = vmatpush1.bf16.msra.mxu0 %v187
    %209 = vmatprep.subr.bf16.mxu0 0
    %210 = vmatpush1.bf16.msra.mxu0 %v186
    %211 = vmatprep.subr.bf16.mxu0 0
    %212 = vmatpush1.bf16.msra.mxu0 %v185
    %213 = vmatprep.subr.bf16.mxu0 0
    %214 = vmatpush2.bf16.msra.mxu0 0
    %215 = vmatprep.subr.bf16.mxu0 0
    %216 = vmatpush2.bf16.msra.mxu0 0
    %217 = vmatprep.subr.bf16.mxu0 0
    %218 = vmatpush2.bf16.msra.mxu0 0
    %219 = vmatprep.subr.bf16.mxu0 0
    %220 = vmatpush2.bf16.msra.mxu0 0
    %221 = vmatprep.subr.bf16.mxu0 0
    %222 = vmatpush2.bf16.msra.mxu0 0
    %223 = vmatprep.subr.bf16.mxu0 0
    %224 = vmatpush2.bf16.msra.mxu0 0
    %225 = vmatprep.subr.bf16.mxu0 0
    %226 = vmatpush2.bf16.msra.mxu0 0
    %227 = vmatprep.subr.bf16.mxu0 0
    %228 = vmatpush2.bf16.msra.mxu0 0
    %229 = vmatprep.mubr.bf16.mxu0 0
    %230 = vmatmul.mubr.bf16.gmra.mxu0 %v195
    %v231 = vpop.f32.mrf.mxu0
    %v232 = vadd.f32 0.0, %v231
    %v233 = vpop.f32.mrf.mxu0
    %v234 = vpop.f32.mrf.mxu0
    %v235 = vadd.f32 0.0, %v234
    %v236 = vpop.f32.mrf.mxu0
    %237 = vdwg.mxu0
    %v238 = vadd.f32 %v158, %v232
    %v239 = vadd.f32 %v159, %v235
    %240 = vst.msk [vmem:[#allocation2] sm:$0xff] %vm59, %v238
    %241 = vst.msk [vmem:[#allocation2 + $0x8] sm:$0xff] %vm59, %v239
    // Predicated region
    $region26: #{tpu_custom_call.1} parent=1 // pred_check
      %p242 = pneg %p22
    $region27: #{tpu_custom_call.1} parent=1 // pred_check_branch
      %244 = sbr.rel (%p242) target = $region29
    $region28: #{tpu_custom_call.1} parent=1 // pred_region
      %v245 = vld [vmem:[#allocation2] sm:$0xff]
      %v246 = vld [vmem:[#allocation2 + $0x8] sm:$0xff]
      %v247 = vld [vmem:[%s4] sm:$0x1]
      %v249 = vlaneseq
      %v250 = vshrl.u32 %v249, 7
      %v251 = vsub.s32 0, %v250
      %v252 = vrot.slane %v247, %v251
      %v254 = vadd.f32 %v245, %v252
      %v255 = vadd.f32 %v246, %v252
      %256 = vst.msk [vmem:[#allocation2] sm:$0xff] %vm59, %v254
      %257 = vst.msk [vmem:[#allocation2 + $0x8] sm:$0xff] %vm59, %v255
    $region29: #{tpu_custom_call.1} parent=1 // pred_fallthru
      _
    // Predicated region
    $region30: #{tpu_custom_call.1} parent=1 // pred_check
      _
    $region31: #{tpu_custom_call.1} parent=1 // pred_check_branch
      %259 = sbr.rel (0) target = $region33
    $region32: #{tpu_custom_call.1} parent=1 // pred_region
      %s261 = ssub.s32 256, 256
      %262 = vsyncadd [#allocation3], %s261
      %s263 = sshll.u32 [#allocation2], 4
      %s264 = int_to_ptr.vmem [resolvable:$true] %s263
      %269 = dma.vmem_to_hbm [thread:$0]  %s264, 256, %s5, [#allocation3], 128, 128, 8
    $region33: #{tpu_custom_call.1} parent=1 // pred_fallthru
      _
    // Predicated region
    $region34: #{tpu_custom_call.1} parent=1 // pred_check
      _
    $region35: #{tpu_custom_call.1} parent=1 // pred_check_branch
      %271 = sbr.rel (0) target = $region37
    $region36: #{tpu_custom_call.1} parent=1 // pred_region
      %272 = dma.done [#allocation3], 256
    $region37: #{tpu_custom_call.1} parent=1 // pred_fallthru
      _
    %273 = vsyncpa [#allocation3], 1

</llo_original>
